<compile_context>
chip_gen: v5e
topology: v5e:2x2
jax: 0.10.0
libtpu: 0.0.40
codegen_flags: <defaults>
</compile_context>

<pallas_src>
import functools

import jax
import jax.numpy as jnp
from jax import lax
from jax.experimental import pallas as pl
from jax.experimental.pallas import tpu as pltpu

_LANE = 128


def _round_up(x, m):
    return (x + m - 1) // m * m


# ---------------------------------------------------------------------------
# Kernel bodies. acc_ref is a (1, TM) f32 running sum of x**p over HW.
# ---------------------------------------------------------------------------
def _accumulate(acc_ref, xp, *, mask_lanes, hw, tk):
    if mask_lanes:  # last HW block is partial -> zero the out-of-bounds lanes
        k = pl.program_id(1)
        col = k * tk + lax.broadcasted_iota(jnp.int32, xp.shape, 1)
        xp = jnp.where(col < hw, xp, 0.0)
    # (TM, 1) column of partial sums -> (1, TM) lane-dense row (XLU relayout).
    acc_ref[...] += jnp.transpose(jnp.sum(xp, axis=-1, keepdims=True))


def _gem_kernel_static_p(x_ref, o_ref, acc_ref, *, p_int, inv_p, eps, inv_hw,
                         hw, tk, mask_lanes):
    """Fast path: p is a compile-time small integer (default GeM p=3)."""
    k = pl.program_id(1)

    @pl.when(k == 0)
    def _():
        acc_ref[...] = jnp.zeros_like(acc_ref)

    x = jnp.maximum(x_ref[...].astype(jnp.float32), eps)   # clamp(min=eps)
    xp = x
    for _ in range(p_int - 1):                              # x**p via VPU muls
        xp = xp * x
    _accumulate(acc_ref, xp, mask_lanes=mask_lanes, hw=hw, tk=tk)

    @pl.when(k == pl.num_programs(1) - 1)
    def _():
        mean_p = acc_ref[...] * inv_hw                      # >= eps**p > 0
        o_ref[...] = jnp.exp(jnp.log(mean_p) * inv_p).astype(o_ref.dtype)


def _gem_kernel_dynamic_p(p_ref, x_ref, o_ref, acc_ref, *, eps, inv_hw,
                          hw, tk, mask_lanes):
    """Generic path: traced scalar p held in SMEM (scalar prefetch)."""
    k = pl.program_id(1)
    p = p_ref[0]

    @pl.when(k == 0)
    def _():
        acc_ref[...] = jnp.zeros_like(acc_ref)

    x = jnp.maximum(x_ref[...].astype(jnp.float32), eps)   # clamp(min=eps)
    xp = jnp.exp(p * jnp.log(x))                            # x**p (EUP)
    _accumulate(acc_ref, xp, mask_lanes=mask_lanes, hw=hw, tk=tk)

    @pl.when(k == pl.num_programs(1) - 1)
    def _():
        mean_p = acc_ref[...] * inv_hw
        o_ref[...] = jnp.exp(jnp.log(mean_p) / p).astype(o_ref.dtype)


# ---------------------------------------------------------------------------
# Tiling selection: generation- and dtype-aware.
# ---------------------------------------------------------------------------
def _pick_tiling(NC, HW, itemsize):
    try:
        info = pltpu.get_tpu_info()
        vmem_cap = getattr(info, "vmem_capacity_bytes", None) or (64 << 20)
    except Exception:
        vmem_cap = 64 << 20                       # conservative (v7x-sized)

    if vmem_cap >= 100 * 1024 * 1024:             # v5e / v6e: 128 MiB VMEM
        budget = 24 * 1024 * 1024                 # double-buffered input pair
        vmem_limit = 64 * 1024 * 1024
    else:                                          # v7x: 64 MiB per TC
        budget = 14 * 1024 * 1024
        vmem_limit = 48 * 1024 * 1024

    hw_pad = _round_up(HW, _LANE)                 # lane padding inside VMEM
    tm_full = budget // (2 * hw_pad * itemsize)   # rows/block keeping full HW

    if tm_full >= _LANE or tm_full >= NC:
        # Common case: whole spatial extent in one block; tile over rows only.
        TK = HW
        TM = min(tm_full, NC)
        if NC > 2 * _LANE:
            # Keep >= ~4 row-grid steps so both v7x TensorCores get work.
            TM = min(TM, _round_up(pl.cdiv(NC, 4), _LANE))
        if TM < NC:
            TM = max(_LANE, (TM // _LANE) * _LANE)   # lane-dense out block
        else:
            TM = NC
    else:
        # Huge feature map: bound the block by splitting the HW reduction.
        TM = NC if NC <= _LANE else _LANE
        tk_cap = max(_LANE, (budget // (2 * TM * itemsize)) // _LANE * _LANE)
        TK = HW if tk_cap >= HW else tk_cap
    return TM, TK, vmem_limit


# ---------------------------------------------------------------------------
# Wrapper.
# ---------------------------------------------------------------------------
def gem_pallas(x, p, eps=1e-6):
    """x: (N, C, H, W); p: scalar exponent (python number, concrete array, or
    traced scalar). Returns (N, C, 1, 1)."""
    N, C, H, W = x.shape
    NC, HW = N * C, H * W
    x2 = x.reshape(NC, HW)
    itemsize = x2.dtype.itemsize

    TM, TK, vmem_limit = _pick_tiling(NC, HW, itemsize)
    grid = (pl.cdiv(NC, TM), pl.cdiv(HW, TK))
    mask_lanes = (grid[1] > 1) and (HW % TK != 0)

    cparams = pltpu.CompilerParams(
        dimension_semantics=("parallel", "arbitrary"),
        vmem_limit_bytes=vmem_limit,
    )
    out_shape = jax.ShapeDtypeStruct((1, NC), x.dtype)    # lane-dense output
    inv_hw = 1.0 / HW

    # Static fast path: any concrete integer-valued p in [1, 8].
    p_static = None
    try:
        p_val = float(jnp.asarray(p).reshape(()))         # fails if traced
        if p_val == round(p_val) and 1 <= int(round(p_val)) <= 8:
            p_static = int(round(p_val))
    except Exception:
        p_static = None

    common = dict(eps=float(eps), inv_hw=inv_hw, hw=HW, tk=TK,
                  mask_lanes=mask_lanes)
    scratch = [pltpu.VMEM((1, TM), jnp.float32)]
    bytes_accessed = int(NC * HW * itemsize + NC * itemsize)

    if p_static is not None:
        kernel = functools.partial(_gem_kernel_static_p, p_int=p_static,
                                   inv_p=1.0 / p_static, **common)
        cost = pl.CostEstimate(flops=int((p_static + 1) * NC * HW),
                               transcendentals=int(2 * NC),
                               bytes_accessed=bytes_accessed)
        out = pl.pallas_call(
            kernel,
            out_shape=out_shape,
            grid_spec=pltpu.PrefetchScalarGridSpec(
                num_scalar_prefetch=0,
                grid=grid,
                in_specs=[pl.BlockSpec((TM, TK), lambda i, k: (i, k))],
                out_specs=pl.BlockSpec((1, TM), lambda i, k: (0, i)),
                scratch_shapes=scratch),
            compiler_params=cparams,
            cost_estimate=cost,
        )(x2)
    else:
        p_arr = jnp.asarray(p, jnp.float32).reshape(1)
        kernel = functools.partial(_gem_kernel_dynamic_p, **common)
        cost = pl.CostEstimate(flops=int(3 * NC * HW),
                               transcendentals=int(2 * NC * HW + 2 * NC),
                               bytes_accessed=bytes_accessed)
        out = pl.pallas_call(
            kernel,
            out_shape=out_shape,
            grid_spec=pltpu.PrefetchScalarGridSpec(
                num_scalar_prefetch=1,
                grid=grid,
                in_specs=[pl.BlockSpec((TM, TK), lambda i, k, p_ref: (i, k))],
                out_specs=pl.BlockSpec((1, TM), lambda i, k, p_ref: (0, i)),
                scratch_shapes=scratch),
            compiler_params=cparams,
            cost_estimate=cost,
        )(p_arr, x2)

    return out.reshape(N, C, 1, 1)


def gem_reference(x, p, eps=1e-6):
    xc = jnp.maximum(x.astype(jnp.float32), eps)
    m = jnp.mean(xc ** p, axis=(-2, -1), keepdims=True)
    return (m ** (1.0 / p)).astype(x.dtype)


if __name__ == "__main__":
    key = jax.random.PRNGKey(0)
    N, C, H, W = 2, 4, 16, 16
    x = jax.random.normal(key, (N, C, H, W), dtype=jnp.float32)
    eps = 1e-6

    y_ref = gem_reference(x, 3.0, eps)

    # Fast path: default GeM p = 3 as a python scalar (static integer kernel).
    y_fast = gem_pallas(x, 3.0, eps)
    jax.block_until_ready(y_fast)
    assert y_fast.shape == (N, C, 1, 1)
    assert jnp.allclose(y_fast, y_ref, rtol=1e-4, atol=1e-5), (
        f"static-p max err {jnp.max(jnp.abs(y_fast - y_ref))}"
    )

    # Concrete learnable weight (GeM.__init__: ones(1)*3) -> still static path.
    p_weight = jnp.ones((1,), jnp.float32) * 3.0
    y_w = gem_pallas(x, p_weight, eps)
    jax.block_until_ready(y_w)
    assert jnp.allclose(y_w, y_ref, rtol=1e-4, atol=1e-5), (
        f"concrete-weight max err {jnp.max(jnp.abs(y_w - y_ref))}"
    )

    # Traced p under jit (training case) -> dynamic exp/log kernel.
    y_dyn = jax.jit(lambda xx, pp: gem_pallas(xx, pp, eps))(x, p_weight)
    jax.block_until_ready(y_dyn)
    assert y_dyn.shape == (N, C, 1, 1)
    assert jnp.allclose(y_dyn, y_ref, rtol=1e-4, atol=1e-5), (
        f"dynamic-p max err {jnp.max(jnp.abs(y_dyn - y_ref))}"
    )

    print("KERNEL_OK")
</pallas_src>

<mosaic_0001>
module attributes {stable_mosaic.version = 11 : i64} {
  func.func @_gem_kernel_static_p(%arg0: i32, %arg1: i32, %arg2: memref<8x256xf32, #tpu.memory_space<vmem>>, %arg3: memref<1x8xf32, #tpu.memory_space<vmem>>, %arg4: memref<1x8xf32, #tpu.memory_space<vmem>>) attributes {dimension_semantics = [#tpu.dimension_semantics<parallel>, #tpu.dimension_semantics<arbitrary>], iteration_bounds = array<i64: 1, 1>, scalar_prefetch = 0 : i64, scratch_operands = 1 : i64, tpu.core_type = #tpu.core_type<tc>, window_params = [{transform_indices = @transform_0, window_bounds = array<i64: 8, 256>}, {transform_indices = @transform_1, window_bounds = array<i64: 1, 8>}]} {
    %c0_i32 = arith.constant 0 : i32
    %0 = arith.cmpi eq, %arg1, %c0_i32 : i32
    %1 = arith.extui %0 : i1 to i32
    %c0_i32_0 = arith.constant 0 : i32
    %2 = arith.cmpi ne, %1, %c0_i32_0 : i32
    scf.if %2 {
      %cst_9 = arith.constant 0.000000e+00 : f32
      %17 = vector.broadcast %cst_9 : f32 to vector<1x8xf32>
      %c0_10 = arith.constant 0 : index
      %c0_11 = arith.constant 0 : index
      %18 = vector.load %arg4[%c0_10, %c0_11] : memref<1x8xf32, #tpu.memory_space<vmem>>, vector<1x8xf32>
      tpu.vector_store %arg4[%c0_10, %c0_11], %17 {strides = array<i32>} : memref<1x8xf32, #tpu.memory_space<vmem>>, vector<1x8xf32>,
    } else {
    }
    %c0 = arith.constant 0 : index
    %c0_1 = arith.constant 0 : index
    %3 = vector.load %arg2[%c0, %c0_1] : memref<8x256xf32, #tpu.memory_space<vmem>>, vector<8x256xf32>
    %cst = arith.constant 9.99999997E-7 : f32
    %4 = vector.broadcast %cst : f32 to vector<8x256xf32>
    %5 = arith.maximumf %3, %4 : vector<8x256xf32>
    %6 = arith.mulf %5, %5 : vector<8x256xf32>
    %7 = arith.mulf %6, %5 : vector<8x256xf32>
    %c0_2 = arith.constant 0 : index
    %c0_3 = arith.constant 0 : index
    %8 = vector.load %arg4[%c0_2, %c0_3] : memref<1x8xf32, #tpu.memory_space<vmem>>, vector<1x8xf32>
    %cst_4 = arith.constant dense<0.000000e+00> : vector<8xf32>
    %9 = vector.multi_reduction <add>, %7, %cst_4 [1] : vector<8x256xf32> to vector<8xf32>
    %10 = vector.shape_cast %9 : vector<8xf32> to vector<8x1xf32>
    %11 = tpu.transpose %10, [1, 0] : vector<8x1xf32> -> vector<1x8xf32>
    %12 = arith.addf %8, %11 : vector<1x8xf32>
    %c0_5 = arith.constant 0 : index
    %c0_6 = arith.constant 0 : index
    %13 = vector.load %arg4[%c0_5, %c0_6] : memref<1x8xf32, #tpu.memory_space<vmem>>, vector<1x8xf32>
    tpu.vector_store %arg4[%c0_5, %c0_6], %12 {strides = array<i32>} : memref<1x8xf32, #tpu.memory_space<vmem>>, vector<1x8xf32>,
    %c0_i32_7 = arith.constant 0 : i32
    %14 = arith.cmpi eq, %arg1, %c0_i32_7 : i32
    %15 = arith.extui %14 : i1 to i32
    %c0_i32_8 = arith.constant 0 : i32
    %16 = arith.cmpi ne, %15, %c0_i32_8 : i32
    scf.if %16 {
      %c0_9 = arith.constant 0 : index
      %c0_10 = arith.constant 0 : index
      %17 = vector.load %arg4[%c0_9, %c0_10] : memref<1x8xf32, #tpu.memory_space<vmem>>, vector<1x8xf32>
      %cst_11 = arith.constant 3.906250e-03 : f32
      %18 = vector.broadcast %cst_11 : f32 to vector<1x8xf32>
      %19 = arith.mulf %17, %18 : vector<1x8xf32>
      %20 = math.log %19 : vector<1x8xf32>
      %cst_12 = arith.constant 0.333333343 : f32
      %21 = vector.broadcast %cst_12 : f32 to vector<1x8xf32>
      %22 = arith.mulf %20, %21 : vector<1x8xf32>
      %23 = math.exp %22 : vector<1x8xf32>
      %c0_13 = arith.constant 0 : index
      %c0_14 = arith.constant 0 : index
      %24 = vector.load %arg3[%c0_13, %c0_14] : memref<1x8xf32, #tpu.memory_space<vmem>>, vector<1x8xf32>
      tpu.vector_store %arg3[%c0_13, %c0_14], %23 {strides = array<i32>} : memref<1x8xf32, #tpu.memory_space<vmem>>, vector<1x8xf32>,
    } else {
    }
    return
  }
  func.func @transform_0(%arg0: i32, %arg1: i32) -> (i32, i32) {
    %c0_i32 = arith.constant 0 : i32
    return %arg0, %arg1 : i32, i32
  }
  func.func @transform_1(%arg0: i32, %arg1: i32) -> (i32, i32) {
    %c0_i32 = arith.constant 0 : i32
    %c0_i32_0 = arith.constant 0 : i32
    return %c0_i32, %arg0 : i32, i32
  }
}

</mosaic_0001>

<llo_original>
// kernel: tpu_custom_call.1
$region0: #{tpu_custom_call.1}
  #allocation0 [shape = 'u32[]', space=smem, size = 0x4, offset = 0x4, fixed_abs, tag = 'smem constant byte address 0x4 - core index']
  #allocation1 [shape = 'u32[72,128]{1,0:T(1,128)}', space=vmem, size = 0x9000, scoped, tag = 'internal scratch']
  #allocation2 [shape = 'f32[1,8]{1,0:T(1,128)}', space=vmem, size = 0x200, scoped, tag = 'scratch operand']
  %s0 = inlined_call_operand.hbm [shape: f32[8,256], index: 0, kind: input, shape index: {}]
  %s1 = inlined_call_operand.hbm [shape: f32[1,8], index: 1, kind: output, shape index: {}]
  %s2 = sld [smem:[#allocation0]]
  $region26: #{tpu_custom_call.1} parent=0
    _
  %s4 = ssub.s32 1, %s2
  %s5 = scalar_select 0, %s4, %s2
  $region1: #{tpu_custom_call.1} parent=0
    #allocation3 [shape = 'u8[8192]{0}', space=vmem, size = 0x2000, scoped, tag = 'input window, operand 0, single buffered']
    #allocation4 [shape = 's32[1]{0}', space=sflag, size = 0x4, scoped, tag = 'scoped memory for tpu_custom_call.1']
    #allocation5 [shape = 's32[1]{0}', space=sflag, size = 0x4, scoped, tag = 'scoped memory for tpu_custom_call.1']
    #allocation6 [shape = 'u8[512]{0}', space=vmem, size = 0x400, scoped, tag = 'output window, operand 0, single buffered']
    %6 = vsyncpa [#allocation4], 0
    %7 = vsyncpa [#allocation5], 0
    // Predicated region
    $region2: #{tpu_custom_call.1} parent=1 // pred_check
      _
    $region3: #{tpu_custom_call.1} parent=1 // pred_check_branch
      %9 = sbr.rel (0) target = $region5
    $region4: #{tpu_custom_call.1} parent=1 // pred_region
      %11 = vsyncadd [#allocation4], 0
      %s13 = sshll.u32 %s0, 4
      %s14 = int_to_ptr.hbm [resolvable:$true] %s13
      %s15 = sshll.u32 [#allocation3], 4
      %s16 = int_to_ptr.vmem [resolvable:$true] %s15
      %18 = dma.hbm_to_vmem [thread:$0]  %s14, 256, %s16, [#allocation4]
    $region5: #{tpu_custom_call.1} parent=1 // pred_fallthru
      _
    // Predicated region
    $region6: #{tpu_custom_call.1} parent=1 // pred_check
      _
    $region7: #{tpu_custom_call.1} parent=1 // pred_check_branch
      %20 = sbr.rel (0) target = $region9
    $region8: #{tpu_custom_call.1} parent=1 // pred_region
      %22 = dma.done [#allocation4], 256
    $region9: #{tpu_custom_call.1} parent=1 // pred_fallthru
      _
    %p23 = scmp.eq.s32.totalorder 0, 0
    // Predicated region
    $region10: #{tpu_custom_call.1} parent=1 // pred_check
      %p24 = pneg %p23
    $region11: #{tpu_custom_call.1} parent=1 // pred_check_branch
      %26 = sbr.rel (%p24) target = $region13
    $region12: #{tpu_custom_call.1} parent=1 // pred_region
      %vm27 = vcmask 57344
      %28 = vst.msk [vmem:[#allocation2] sm:$0x1] %vm27, 0.0
    $region13: #{tpu_custom_call.1} parent=1 // pred_fallthru
      _
    %v29 = vld [vmem:[#allocation3] sm:$0xff]
    %v30 = vld [vmem:[#allocation3 + $0x8] sm:$0xff]
    %v31 = vmax.f32 %v29, 1e-06
    %v32 = vmax.f32 %v30, 1e-06
    %v33 = vmul.f32 %v31, %v31
    %v34 = vmul.f32 %v32, %v32
    %v35 = vmul.f32 %v33, %v31
    %v36 = vmul.f32 %v34, %v32
    %v37 = vld [vmem:[#allocation2] sm:$0x1]
    %v38 = vadd.f32 %v35, %v36
    %39 = vadd.xlane.f32.xlu0 %v38
    %v40 = vpop.xlane.xlu0 %39
    %41 = vxpose.xlu0.b32.start [1/16] %v40, 128
    %42 = vxpose.xlu0.b32.cont [2/16] 0.0, 128
    %43 = vxpose.xlu0.b32.cont [3/16] 0.0, 128
    %44 = vxpose.xlu0.b32.cont [4/16] 0.0, 128
    %45 = vxpose.xlu0.b32.cont [5/16] 0.0, 128
    %46 = vxpose.xlu0.b32.cont [6/16] 0.0, 128
    %47 = vxpose.xlu0.b32.cont [7/16] 0.0, 128
    %48 = vxpose.xlu0.b32.cont [8/16] 0.0, 128
    %49 = vxpose.xlu0.b32.cont [9/16] 0.0, 128
    %50 = vxpose.xlu0.b32.cont [10/16] 0.0, 128
    %51 = vxpose.xlu0.b32.cont [11/16] 0.0, 128
    %52 = vxpose.xlu0.b32.cont [12/16] 0.0, 128
    %53 = vxpose.xlu0.b32.cont [13/16] 0.0, 128
    %54 = vxpose.xlu0.b32.cont [14/16] 0.0, 128
    %55 = vxpose.xlu0.b32.cont [15/16] 0.0, 128
    %56 = vxpose.xlu0.b32.end [16/16] 0.0, 128
    %v57 = vpop.trf.xlu0
    %v58 = vpop.trf.xlu0
    %v59 = vpop.trf.xlu0
    %v60 = vpop.trf.xlu0
    %v61 = vpop.trf.xlu0
    %v62 = vpop.trf.xlu0
    %v63 = vpop.trf.xlu0
    %v64 = vpop.trf.xlu0
    %v65 = vpop.trf.xlu0
    %v66 = vpop.trf.xlu0
    %v67 = vpop.trf.xlu0
    %v68 = vpop.trf.xlu0
    %v69 = vpop.trf.xlu0
    %v70 = vpop.trf.xlu0
    %v71 = vpop.trf.xlu0
    %v72 = vpop.trf.xlu0
    %v73 = vadd.f32 %v37, %v57
    %vm74 = vcmask 57344
    %75 = vst.msk [vmem:[#allocation2] sm:$0x1] %vm74, %v73
    // Predicated region
    $region14: #{tpu_custom_call.1} parent=1 // pred_check
      %p76 = pneg %p23
    $region15: #{tpu_custom_call.1} parent=1 // pred_check_branch
      %78 = sbr.rel (%p76) target = $region17
    $region16: #{tpu_custom_call.1} parent=1 // pred_region
      %v79 = vld [vmem:[#allocation2] sm:$0x1]
      %v80 = vmul.f32 %v79, 0.00390625
      %v81 = vlog2.pop %v80
      %v82 = vmul.f32 %v81, 0.6931472
      %v83 = vmul.f32 %v82, 0.33333334
      %v84 = vmul.f32 %v83, 1.442695
      %v85 = vpow.pop %v84
      %86 = vst.msk [vmem:[#allocation6] sm:$0x1] %vm74, %v85
    $region17: #{tpu_custom_call.1} parent=1 // pred_fallthru
      _
    // Predicated region
    $region18: #{tpu_custom_call.1} parent=1 // pred_check
      _
    $region19: #{tpu_custom_call.1} parent=1 // pred_check_branch
      %88 = sbr.rel (0) target = $region21
    $region20: #{tpu_custom_call.1} parent=1 // pred_region
      %90 = vsyncadd [#allocation5], 0
      %s92 = sshll.u32 [#allocation6], 4
      %s93 = int_to_ptr.vmem [resolvable:$true] %s92
      %s94 = sshll.u32 %s1, 4
      %s95 = int_to_ptr.hbm [resolvable:$true] %s94
      %97 = dma.vmem_to_hbm [thread:$0]  %s93, 16, %s95, [#allocation5]
    $region21: #{tpu_custom_call.1} parent=1 // pred_fallthru
      _
    // Predicated region
    $region22: #{tpu_custom_call.1} parent=1 // pred_check
      _
    $region23: #{tpu_custom_call.1} parent=1 // pred_check_branch
      %99 = sbr.rel (0) target = $region25
    $region24: #{tpu_custom_call.1} parent=1 // pred_region
      %101 = dma.done [#allocation5], 16
    $region25: #{tpu_custom_call.1} parent=1 // pred_fallthru
      _
    %102 = vsyncpa [#allocation4], 1
    %103 = vsyncpa [#allocation5], 1

</llo_original>
